<compile_context>
chip_gen: v7x
topology: tpu7x:2x2x1
jax: 0.10.0
libtpu: 0.0.40
codegen_flags: <defaults>
</compile_context>

<pallas_src>
import functools
import math

import jax
import jax.numpy as jnp
from jax.experimental import pallas as pl
from jax.experimental.pallas import tpu as pltpu


_VMEM_LIMIT_BYTES = 48 * 1024 * 1024   # fits v7x's 64 MiB physical VMEM; >> defaults
_VMEM_BUDGET_BYTES = 36 * 1024 * 1024  # double-buffered working-set budget (headroom)


# ----------------------------------------------------------------------------- helpers
def _round_up(x, m):
    return ((x + m - 1) // m) * m


def _pick_resident_tiles(m, k, n, x_itemsize, w_itemsize, out_itemsize):
    """Tiles for the resident-weight (full-K) variant, or None if it won't fit."""
    # Output-feature tile: full-N block when small, otherwise the largest
    # lane-aligned divisor so there is no N padding and no ragged tile.
    if n <= 1024:
        tn = n
    else:
        tn = None
        for d in (1024, 896, 768, 640, 512, 384, 256, 128):
            if n % d == 0:
                tn = d
                break
        if tn is None:
            return None  # oddly shaped large N -> K-tiled fallback (pads there)

    tm = min(512, _round_up(m, 16))  # multiple of 16: bf16 packs 2 rows/sublane

    def working_set(tm_):
        # double-buffered X slab + W slab + output tile
        return 2 * (tm_ * k * x_itemsize + k * tn * w_itemsize
                    + tm_ * tn * out_itemsize)

    while working_set(tm) > _VMEM_BUDGET_BYTES and tm > 16:
        tm = _round_up(tm // 2, 16)
    if working_set(tm) > _VMEM_BUDGET_BYTES:
        return None
    return tm, tn


def _pick_tk(k):
    """Exact-divisor K tile when possible (no zero K tiles / no K padding)."""
    for d in (2048, 1792, 1536, 1280, 1024, 896, 768, 640, 512, 384, 256, 128):
        if k % d == 0:
            return d, k
    kp = _round_up(k, 512)
    return 512, kp


# ----------------------------------------------------------------------------- kernels
def _matmul_bias_kernel(x_ref, w_ref, b_ref, o_ref):
    """Resident-weight variant: one (tm, tn) output tile, full-K contraction.

    Activations are cast to the weight's compute dtype in-kernel (VPU work,
    hidden under DMA/MXU) so the wrapper never does an activation-sized
    cast round trip in HBM.  No scratch / no reduction axis needed.
    """
    x = x_ref[...].astype(w_ref.dtype)
    acc = jnp.dot(x, w_ref[...], preferred_element_type=jnp.float32)
    o_ref[...] = (acc + b_ref[...].astype(jnp.float32)).astype(o_ref.dtype)


def _matmul_bias_ktiled_kernel(x_ref, w_ref, b_ref, o_ref, acc_ref):
    """Fallback for very large K: reduction over grid axis 2 with f32 scratch."""
    kk = pl.program_id(2)

    @pl.when(kk == 0)
    def _init():
        acc_ref[...] = jnp.zeros_like(acc_ref)

    acc_ref[...] += jnp.dot(
        x_ref[...].astype(w_ref.dtype), w_ref[...],
        preferred_element_type=jnp.float32)

    @pl.when(kk == pl.num_programs(2) - 1)
    def _finalize():
        o_ref[...] = (
            acc_ref[...] + b_ref[...].astype(jnp.float32)
        ).astype(o_ref.dtype)


# ----------------------------------------------------------------------------- drivers
def _matmul_bias_resident(x2d, w, b, *, out_dtype, tm, tn):
    """out = x2d @ w + b with the full-K weight slab resident per grid step."""
    m, k = x2d.shape
    k2, n = w.shape
    assert k == k2, (k, k2)
    assert n % tn == 0

    mp = _round_up(m, tm)
    if mp != m:
        x2d = jnp.pad(x2d, ((0, mp - m), (0, 0)))
    gm, gn = mp // tm, n // tn

    # Loop-nest order: stream the LARGER operand from HBM only once.
    #   m-outer: X read once, W read gm times.   n-outer: W once, X gn times.
    x_traffic = mp * k * x2d.dtype.itemsize
    w_traffic = k * n * w.dtype.itemsize
    m_outer = (gm * w_traffic) <= (gn * x_traffic)

    if m_outer:
        grid = (gm, gn)
        x_map = lambda i, j: (i, 0)
        w_map = lambda i, j: (0, j)
        b_map = lambda i, j: (0, j)
        o_map = lambda i, j: (i, j)
    else:
        grid = (gn, gm)
        x_map = lambda j, i: (i, 0)
        w_map = lambda j, i: (0, j)
        b_map = lambda j, i: (0, j)
        o_map = lambda j, i: (i, j)

    cost = pl.CostEstimate(
        flops=2 * m * k * n,
        transcendentals=0,
        bytes_accessed=(m * k * x2d.dtype.itemsize
                        + k * n * w.dtype.itemsize
                        + b.size * b.dtype.itemsize
                        + m * n * jnp.dtype(out_dtype).itemsize))

    out = pl.pallas_call(
        _matmul_bias_kernel,
        out_shape=jax.ShapeDtypeStruct((mp, n), out_dtype),
        grid_spec=pltpu.PrefetchScalarGridSpec(
            num_scalar_prefetch=0,
            grid=grid,
            in_specs=[
                pl.BlockSpec((tm, k), x_map),     # full-K activation slab
                pl.BlockSpec((k, tn), w_map),     # full-K weight slab
                pl.BlockSpec((1, tn), b_map),     # bias row
            ],
            out_specs=pl.BlockSpec((tm, tn), o_map),
        ),
        compiler_params=pltpu.CompilerParams(
            dimension_semantics=("parallel", "parallel"),
            vmem_limit_bytes=_VMEM_LIMIT_BYTES),
        cost_estimate=cost,
    )(x2d, w, b)

    if mp != m:
        out = out[:m]
    return out


def _matmul_bias_ktiled(x2d, w, b, *, out_dtype, tm, tn, tk, kp):
    """Fallback: K-tiled reduction (only used when nx is extremely large)."""
    m, k = x2d.shape
    _, n = w.shape
    mp, np_ = _round_up(m, tm), _round_up(n, tn)

    # TODO(synk): hoist the K/N padding of W into prepare_partitioned_params if
    # this fallback path (nx large enough to blow the VMEM budget) is ever hot.
    if (mp, kp) != (m, k):
        x2d = jnp.pad(x2d, ((0, mp - m), (0, kp - k)))
    if (kp, np_) != (k, n):
        w = jnp.pad(w, ((0, kp - k), (0, np_ - n)))
    if np_ != n:
        b = jnp.pad(b, ((0, 0), (0, np_ - n)))

    grid = (mp // tm, np_ // tn, kp // tk)

    cost = pl.CostEstimate(
        flops=2 * m * k * n,
        transcendentals=0,
        bytes_accessed=(m * k * x2d.dtype.itemsize
                        + k * n * w.dtype.itemsize
                        + b.size * b.dtype.itemsize
                        + m * n * jnp.dtype(out_dtype).itemsize))

    out = pl.pallas_call(
        _matmul_bias_ktiled_kernel,
        out_shape=jax.ShapeDtypeStruct((mp, np_), out_dtype),
        grid_spec=pltpu.PrefetchScalarGridSpec(
            num_scalar_prefetch=0,
            grid=grid,
            in_specs=[
                pl.BlockSpec((tm, tk), lambda i, j, kk: (i, kk)),
                pl.BlockSpec((tk, tn), lambda i, j, kk: (kk, j)),
                pl.BlockSpec((1, tn), lambda i, j, kk: (0, j)),
            ],
            out_specs=pl.BlockSpec((tm, tn), lambda i, j, kk: (i, j)),
            scratch_shapes=[pltpu.VMEM((tm, tn), jnp.float32)],
        ),
        compiler_params=pltpu.CompilerParams(
            dimension_semantics=("parallel", "parallel", "arbitrary"),
            vmem_limit_bytes=_VMEM_LIMIT_BYTES),
        cost_estimate=cost,
    )(x2d, w, b)

    if (mp, np_) != (m, n):
        out = out[:m, :n]
    return out


# ----------------------------------------------------------------------------- module API
def prepare_partitioned_params(weight_splits, bias_splits,
                               compute_dtype=jnp.bfloat16):
    """Setup-time work, hoisted out of the per-call hot path:
       concat the per-'device' shards, cast W to the MXU compute dtype (bf16 by
       default; f32 accumulation is kept in-kernel), and lane-pad the
       output-feature axis only in the rare case it is both large and unaligned.

    Returns (w, b, nf) with w: (nx, nf_padded), b: (1, nf_padded), nf original.
    """
    w = jnp.concatenate(weight_splits, axis=1)           # (nx, nf)
    b = jnp.concatenate(bias_splits, axis=0)[None, :]    # (1, nf)
    nf = int(w.shape[1])
    if compute_dtype is not None:
        w = w.astype(compute_dtype)
    if nf > 1024 and nf % 128 != 0:
        pad = _round_up(nf, 128) - nf
        w = jnp.pad(w, ((0, 0), (0, pad)))
        b = jnp.pad(b, ((0, 0), (0, pad)))
    return w, b, nf


def partitioned_conv1d(x, w, b, *, nf=None):
    """Forward: (..., nx) @ (nx, nf) + (nf,) -> (..., nf).

    Semantics match PartitionedConv1D.forward (the per-partition addmm's
    concatenated along the last axis), with the shard concat pre-done by
    `prepare_partitioned_params`.
    """
    nx = x.shape[-1]
    assert w.shape[0] == nx, (w.shape, nx)
    n_pad = w.shape[1]
    nf = n_pad if nf is None else nf
    lead = x.shape[:-1]
    m = math.prod(lead) if lead else 1

    out_dtype = x.dtype
    x2d = x.reshape(m, nx)

    tiles = _pick_resident_tiles(
        m, nx, n_pad,
        x2d.dtype.itemsize, w.dtype.itemsize, jnp.dtype(out_dtype).itemsize)

    if tiles is not None:
        tm, tn = tiles
        out2d = _matmul_bias_resident(x2d, w, b, out_dtype=out_dtype, tm=tm, tn=tn)
    else:
        tm = min(512, _round_up(m, 16))
        tn = min(512, _round_up(n_pad, 128))
        tk, kp = _pick_tk(nx)
        out2d = _matmul_bias_ktiled(x2d, w, b, out_dtype=out_dtype,
                                    tm=tm, tn=tn, tk=tk, kp=kp)

    if n_pad != nf:
        out2d = out2d[:, :nf]
    return out2d.reshape(*lead, nf)


def init_partitioned_conv1d(key, nf, nx, num_devices=2, dtype=jnp.float32):
    """Mirrors PartitionedConv1D.__init__ / reset_parameters: weight shards
    ~ Normal(0, 0.02), biases = 0, nf split across logical 'devices'."""
    split_sizes = [nf // num_devices for _ in range(num_devices)]
    split_sizes[-1] += nf % num_devices
    keys = jax.random.split(key, num_devices)
    weight_splits = [
        0.02 * jax.random.normal(k, (nx, s), dtype=dtype)
        for k, s in zip(keys, split_sizes)
    ]
    bias_splits = [jnp.zeros((s,), dtype=dtype) for s in split_sizes]
    return weight_splits, bias_splits


# ----------------------------------------------------------------------------- demo / check
if __name__ == "__main__":
    # Small shapes consistent with the module: x (batch, seq, nx), nf output feats.
    batch, seq, nx, nf = 2, 8, 128, 256
    num_devices = 2  # number of logical weight partitions

    key = jax.random.PRNGKey(0)
    k_x, k_w = jax.random.split(key)
    x = jax.random.normal(k_x, (batch, seq, nx), dtype=jnp.float32)
    weight_splits, bias_splits = init_partitioned_conv1d(k_w, nf, nx, num_devices)

    # Concatenate shards + cast to bf16 once (setup-time), then run the kernel.
    w_full, b_full, nf_full = prepare_partitioned_params(weight_splits, bias_splits)
    fwd = jax.jit(functools.partial(partitioned_conv1d, nf=nf_full))
    out = fwd(x, w_full, b_full)
    out = jax.block_until_ready(out)

    # Pure-JAX reference with identical operand precision (bf16 in, f32 acc).
    w_ref = jnp.concatenate(weight_splits, axis=1).astype(jnp.bfloat16)
    b_ref = jnp.concatenate(bias_splits, axis=0)
    ref = jnp.dot(x.reshape(-1, nx).astype(jnp.bfloat16), w_ref,
                  preferred_element_type=jnp.float32) + b_ref
    ref = ref.reshape(batch, seq, nf)

    assert out.shape == (batch, seq, nf), out.shape
    assert out.dtype == x.dtype, out.dtype
    assert jnp.allclose(out, ref, atol=2e-3, rtol=2e-3), float(
        jnp.max(jnp.abs(out - ref)))

    print("KERNEL_OK")
</pallas_src>

<mosaic_0001>
module attributes {stable_mosaic.version = 11 : i64} {
  func.func @_matmul_bias_kernel(%arg0: i32, %arg1: i32, %arg2: memref<16x128xf32, #tpu.memory_space<vmem>>, %arg3: memref<128x256xbf16, #tpu.memory_space<vmem>>, %arg4: memref<1x256xf32, #tpu.memory_space<vmem>>, %arg5: memref<16x256xf32, #tpu.memory_space<vmem>>) attributes {dimension_semantics = [#tpu.dimension_semantics<parallel>, #tpu.dimension_semantics<parallel>], iteration_bounds = array<i64: 1, 1>, scalar_prefetch = 0 : i64, scratch_operands = 0 : i64, tpu.core_type = #tpu.core_type<tc>, window_params = [{transform_indices = @transform_0, window_bounds = array<i64: 16, 128>}, {transform_indices = @transform_1, window_bounds = array<i64: 128, 256>}, {transform_indices = @transform_2, window_bounds = array<i64: 1, 256>}, {transform_indices = @transform_3, window_bounds = array<i64: 16, 256>}]} {
    %c0 = arith.constant 0 : index
    %c0_0 = arith.constant 0 : index
    %0 = vector.load %arg2[%c0, %c0_0] : memref<16x128xf32, #tpu.memory_space<vmem>>, vector<16x128xf32>
    %1 = arith.truncf %0 : vector<16x128xf32> to vector<16x128xbf16>
    %c0_1 = arith.constant 0 : index
    %c0_2 = arith.constant 0 : index
    %2 = vector.load %arg3[%c0_1, %c0_2] : memref<128x256xbf16, #tpu.memory_space<vmem>>, vector<128x256xbf16>
    %cst = arith.constant dense<0.000000e+00> : vector<16x256xf32>
    %3 = tpu.matmul %1, %2, %cst {dimension_numbers = #tpu.dot_dimension_numbers<[1], [0], [0], [1], [0, 0, 1, 1], [], []>} : vector<16x128xbf16>, vector<128x256xbf16>, vector<16x256xf32> -> vector<16x256xf32>
    %c0_3 = arith.constant 0 : index
    %c0_4 = arith.constant 0 : index
    %4 = vector.load %arg4[%c0_3, %c0_4] : memref<1x256xf32, #tpu.memory_space<vmem>>, vector<1x256xf32>
    %5 = vector.broadcast %4 : vector<1x256xf32> to vector<16x256xf32>
    %6 = arith.addf %3, %5 : vector<16x256xf32>
    %c0_5 = arith.constant 0 : index
    %c0_6 = arith.constant 0 : index
    %7 = vector.load %arg5[%c0_5, %c0_6] : memref<16x256xf32, #tpu.memory_space<vmem>>, vector<16x256xf32>
    tpu.vector_store %arg5[%c0_5, %c0_6], %6 {strides = array<i32>} : memref<16x256xf32, #tpu.memory_space<vmem>>, vector<16x256xf32>,
    return
  }
  func.func @transform_0(%arg0: i32, %arg1: i32) -> (i32, i32) {
    %c0_i32 = arith.constant 0 : i32
    %c0_i32_0 = arith.constant 0 : i32
    return %arg1, %c0_i32 : i32, i32
  }
  func.func @transform_1(%arg0: i32, %arg1: i32) -> (i32, i32) {
    %c0_i32 = arith.constant 0 : i32
    %c0_i32_0 = arith.constant 0 : i32
    return %c0_i32, %arg0 : i32, i32
  }
  func.func @transform_2(%arg0: i32, %arg1: i32) -> (i32, i32) {
    %c0_i32 = arith.constant 0 : i32
    %c0_i32_0 = arith.constant 0 : i32
    return %c0_i32, %arg0 : i32, i32
  }
  func.func @transform_3(%arg0: i32, %arg1: i32) -> (i32, i32) {
    %c0_i32 = arith.constant 0 : i32
    return %arg1, %arg0 : i32, i32
  }
}

</mosaic_0001>

<llo_original>
// kernel: partitioned_conv1d.1
$region0: #{partitioned_conv1d.1}
  #allocation0 [shape = 'u32[]', space=smem, size = 0x4, offset = 0x4, fixed_abs, tag = 'smem constant byte address 0x4 - core index']
  #allocation1 [shape = 'u32[144,128]{1,0:T(1,128)}', space=vmem, size = 0x12000, scoped, tag = 'internal scratch']
  %s0 = inlined_call_operand.hbm [shape: f32[16,128], index: 0, kind: input, shape index: {}]
  %s1 = inlined_call_operand.hbm [shape: bf16[128,256], index: 1, kind: input, shape index: {}]
  %s2 = inlined_call_operand.vmem [shape: f32[1,256], index: 2, kind: input, shape index: {}]
  %s3 = inlined_call_operand.hbm [shape: f32[16,256], index: 3, kind: output, shape index: {}]
  %s4 = sld [smem:[#allocation0]]
  $region30: #{partitioned_conv1d.1} parent=0
    _
  %s6 = ssub.s32 1, %s4
  %s7 = scalar_select 0, %s6, %s4
  $region1: #{partitioned_conv1d.1} parent=0
    #allocation2 [shape = 'u8[8192]{0}', space=vmem, size = 0x2000, scoped, tag = 'input window, operand 0, single buffered']
    #allocation3 [shape = 's32[1]{0}', space=sflag, size = 0x4, scoped, tag = 'scoped memory for partitioned_conv1d.1']
    #allocation4 [shape = 's32[1]{0}', space=sflag, size = 0x4, scoped, tag = 'scoped memory for partitioned_conv1d.1']
    #allocation5 [shape = 'u8[65536]{0}', space=vmem, size = 0x10000, scoped, tag = 'input window, operand 1, single buffered']
    #allocation6 [shape = 's32[1]{0}', space=sflag, size = 0x4, scoped, tag = 'scoped memory for partitioned_conv1d.1']
    #allocation7 [shape = 'u8[16384]{0}', space=vmem, size = 0x4000, scoped, tag = 'output window, operand 0, single buffered']
    %8 = vsyncpa [#allocation3], 0
    %9 = vsyncpa [#allocation6], 0
    %10 = vsyncpa [#allocation4], 0
    // Predicated region
    $region2: #{partitioned_conv1d.1} parent=1 // pred_check
      _
    $region3: #{partitioned_conv1d.1} parent=1 // pred_check_branch
      %12 = sbr.rel (0) target = $region5
    $region4: #{partitioned_conv1d.1} parent=1 // pred_region
      %s14 = ssub.s32 256, 256
      %15 = vsyncadd [#allocation3], %s14
      %s16 = sshll.u32 [#allocation2], 4
      %s17 = int_to_ptr.vmem [resolvable:$true] %s16
      %22 = dma.hbm_to_vmem [thread:$0]  %s0, 256, %s17, [#allocation3], 128, 128, 8
    $region5: #{partitioned_conv1d.1} parent=1 // pred_fallthru
      _
    // Predicated region
    $region6: #{partitioned_conv1d.1} parent=1 // pred_check
      _
    $region7: #{partitioned_conv1d.1} parent=1 // pred_check_branch
      %24 = sbr.rel (0) target = $region9
    $region8: #{partitioned_conv1d.1} parent=1 // pred_region
      %s26 = ssub.s32 2048, 2048
      %27 = vsyncadd [#allocation6], %s26
      %s28 = sshll.u32 [#allocation5], 4
      %s29 = int_to_ptr.vmem [resolvable:$true] %s28
      %34 = dma.hbm_to_vmem [thread:$0]  %s1, 2048, %s29, [#allocation6], 128, 128, 8
    $region9: #{partitioned_conv1d.1} parent=1 // pred_fallthru
      _
    // Predicated region
    $region10: #{partitioned_conv1d.1} parent=1 // pred_check
      _
    $region11: #{partitioned_conv1d.1} parent=1 // pred_check_branch
      %36 = sbr.rel (0) target = $region13
    $region12: #{partitioned_conv1d.1} parent=1 // pred_region
      _
    $region13: #{partitioned_conv1d.1} parent=1 // pred_fallthru
      _
    // Predicated region
    $region14: #{partitioned_conv1d.1} parent=1 // pred_check
      _
    $region15: #{partitioned_conv1d.1} parent=1 // pred_check_branch
      %38 = sbr.rel (0) target = $region17
    $region16: #{partitioned_conv1d.1} parent=1 // pred_region
      %39 = dma.done [#allocation3], 256
    $region17: #{partitioned_conv1d.1} parent=1 // pred_fallthru
      _
    // Predicated region
    $region18: #{partitioned_conv1d.1} parent=1 // pred_check
      _
    $region19: #{partitioned_conv1d.1} parent=1 // pred_check_branch
      %41 = sbr.rel (0) target = $region21
    $region20: #{partitioned_conv1d.1} parent=1 // pred_region
      %42 = dma.done [#allocation6], 2048
    $region21: #{partitioned_conv1d.1} parent=1 // pred_fallthru
      _
    %v44 = vld [vmem:[#allocation2] sm:$0xff]
    %v45 = vld [vmem:[#allocation2 + $0x8] sm:$0xff]
    %v46 = vpack.c.bf16 %v45, %v44
    %v47 = vld [vmem:[#allocation5] sm:$0xff]
    %v48 = vld [vmem:[#allocation5 + $0x8] sm:$0xff]
    %v49 = vld [vmem:[#allocation5 + $0x10] sm:$0xff]
    %v50 = vld [vmem:[#allocation5 + $0x18] sm:$0xff]
    %v51 = vld [vmem:[#allocation5 + $0x20] sm:$0xff]
    %v52 = vld [vmem:[#allocation5 + $0x28] sm:$0xff]
    %v53 = vld [vmem:[#allocation5 + $0x30] sm:$0xff]
    %v54 = vld [vmem:[#allocation5 + $0x38] sm:$0xff]
    %v55 = vld [vmem:[#allocation5 + $0x40] sm:$0xff]
    %v56 = vld [vmem:[#allocation5 + $0x48] sm:$0xff]
    %v57 = vld [vmem:[#allocation5 + $0x50] sm:$0xff]
    %v58 = vld [vmem:[#allocation5 + $0x58] sm:$0xff]
    %v59 = vld [vmem:[#allocation5 + $0x60] sm:$0xff]
    %v60 = vld [vmem:[#allocation5 + $0x68] sm:$0xff]
    %v61 = vld [vmem:[#allocation5 + $0x70] sm:$0xff]
    %v62 = vld [vmem:[#allocation5 + $0x78] sm:$0xff]
    %v63 = vld [vmem:[%s2] sm:$0x3]
    %v65 = vlaneseq
    %v66 = vshrl.u32 %v65, 7
    %v67 = vsub.s32 0, %v66
    %v68 = vrot.slane %v63, %v67
    %v69 = vlaneseq
    %v70 = vshrl.u32 %v69, 7
    %v71 = vsub.s32 1, %v70
    %v72 = vrot.slane %v63, %v71
    %v91 = vunpack.c.l.b16 %v47
    %v92 = vunpack.c.h.b16 %v47
    %v93 = vunpack.c.l.b16 %v48
    %v94 = vunpack.c.h.b16 %v48
    %v95 = vunpack.c.l.b16 %v49
    %v96 = vunpack.c.h.b16 %v49
    %v97 = vunpack.c.l.b16 %v50
    %v98 = vunpack.c.h.b16 %v50
    %v99 = vunpack.c.l.b16 %v51
    %v100 = vunpack.c.h.b16 %v51
    %v101 = vunpack.c.l.b16 %v52
    %v102 = vunpack.c.h.b16 %v52
    %v103 = vunpack.c.l.b16 %v53
    %v104 = vunpack.c.h.b16 %v53
    %v105 = vunpack.c.l.b16 %v54
    %v106 = vunpack.c.h.b16 %v54
    %v107 = vunpack.c.l.b16 %v55
    %v108 = vunpack.c.h.b16 %v55
    %v109 = vunpack.c.l.b16 %v56
    %v110 = vunpack.c.h.b16 %v56
    %v111 = vunpack.c.l.b16 %v57
    %v112 = vunpack.c.h.b16 %v57
    %v113 = vunpack.c.l.b16 %v58
    %v114 = vunpack.c.h.b16 %v58
    %v115 = vunpack.c.l.b16 %v59
    %v116 = vunpack.c.h.b16 %v59
    %v117 = vunpack.c.l.b16 %v60
    %v118 = vunpack.c.h.b16 %v60
    %v119 = vunpack.c.l.b16 %v61
    %v120 = vunpack.c.h.b16 %v61
    %v121 = vunpack.c.l.b16 %v62
    %v122 = vunpack.c.h.b16 %v62
    %v123 = vpack.c.b16 %v93, %v91
    %v124 = vpack.c.b16 %v94, %v92
    %v125 = vpack.c.b16 %v97, %v95
    %v126 = vpack.c.b16 %v98, %v96
    %v127 = vpack.c.b16 %v101, %v99
    %v128 = vpack.c.b16 %v102, %v100
    %v129 = vpack.c.b16 %v105, %v103
    %v130 = vpack.c.b16 %v106, %v104
    %v131 = vpack.c.b16 %v109, %v107
    %v132 = vpack.c.b16 %v110, %v108
    %v133 = vpack.c.b16 %v113, %v111
    %v134 = vpack.c.b16 %v114, %v112
    %v135 = vpack.c.b16 %v117, %v115
    %v136 = vpack.c.b16 %v118, %v116
    %v137 = vpack.c.b16 %v121, %v119
    %v138 = vpack.c.b16 %v122, %v120
    %155 = vmatprep.subr.bf16.mxu0 %v124
    %156 = vmatpush1.bf16.msra.mxu0 %v123
    %157 = vmatprep.subr.bf16.mxu0 %v126
    %158 = vmatpush1.bf16.msra.mxu0 %v125
    %159 = vmatprep.subr.bf16.mxu0 %v128
    %160 = vmatpush1.bf16.msra.mxu0 %v127
    %161 = vmatprep.subr.bf16.mxu0 %v130
    %162 = vmatpush1.bf16.msra.mxu0 %v129
    %163 = vmatprep.subr.bf16.mxu0 %v132
    %164 = vmatpush1.bf16.msra.mxu0 %v131
    %165 = vmatprep.subr.bf16.mxu0 %v134
    %166 = vmatpush1.bf16.msra.mxu0 %v133
    %167 = vmatprep.subr.bf16.mxu0 %v136
    %168 = vmatpush1.bf16.msra.mxu0 %v135
    %169 = vmatprep.subr.bf16.mxu0 %v138
    %170 = vmatpush1.bf16.msra.mxu0 %v137
    %171 = vmatprep.subr.bf16.mxu0 0
    %172 = vmatpush1.bf16.msra.mxu0 0
    %173 = vmatprep.subr.bf16.mxu0 0
    %174 = vmatpush1.bf16.msra.mxu0 0
    %175 = vmatprep.subr.bf16.mxu0 0
    %176 = vmatpush1.bf16.msra.mxu0 0
    %177 = vmatprep.subr.bf16.mxu0 0
    %178 = vmatpush1.bf16.msra.mxu0 0
    %179 = vmatprep.subr.bf16.mxu0 0
    %180 = vmatpush1.bf16.msra.mxu0 0
    %181 = vmatprep.subr.bf16.mxu0 0
    %182 = vmatpush1.bf16.msra.mxu0 0
    %183 = vmatprep.subr.bf16.mxu0 0
    %184 = vmatpush1.bf16.msra.mxu0 0
    %185 = vmatprep.subr.bf16.mxu0 0
    %186 = vmatpush1.bf16.msra.mxu0 0
    %187 = vmatprep.mubr.bf16.mxu0 0
    %188 = vmatmul.mubr.bf16.gmra.mrb[0].mxu0 %v46
    %v189 = vpop.f32.mrb[0].mxu0
    %v190 = vadd.f32 %v68, %v189
    %v191 = vpop.f32.mrb[0].mxu0
    %v192 = vadd.f32 %v72, %v191
    %v193 = vpop.f32.mrb[0].mxu0
    %v194 = vadd.f32 %v68, %v193
    %v195 = vpop.f32.mrb[0].mxu0
    %v196 = vadd.f32 %v72, %v195
    %197 = vdwg.mxu0
    %198 = vst [vmem:[#allocation7] sm:$0xff] %v190
    %199 = vst [vmem:[#allocation7 + $0x8] sm:$0xff] %v192
    %200 = vst [vmem:[#allocation7 + $0x10] sm:$0xff] %v194
    %201 = vst [vmem:[#allocation7 + $0x18] sm:$0xff] %v196
    // Predicated region
    $region22: #{partitioned_conv1d.1} parent=1 // pred_check
      _
    $region23: #{partitioned_conv1d.1} parent=1 // pred_check_branch
      %203 = sbr.rel (0) target = $region25
    $region24: #{partitioned_conv1d.1} parent=1 // pred_region
      %s205 = ssub.s32 512, 512
      %206 = vsyncadd [#allocation4], %s205
      %s207 = sshll.u32 [#allocation7], 4
      %s208 = int_to_ptr.vmem [resolvable:$true] %s207
      %213 = dma.vmem_to_hbm [thread:$0]  %s208, 512, %s3, [#allocation4], 256, 256, 16
    $region25: #{partitioned_conv1d.1} parent=1 // pred_fallthru
      _
    // Predicated region
    $region26: #{partitioned_conv1d.1} parent=1 // pred_check
      _
    $region27: #{partitioned_conv1d.1} parent=1 // pred_check_branch
      %215 = sbr.rel (0) target = $region29
    $region28: #{partitioned_conv1d.1} parent=1 // pred_region
      %216 = dma.done [#allocation4], 512
    $region29: #{partitioned_conv1d.1} parent=1 // pred_fallthru
      _
    %217 = vsyncpa [#allocation3], 1
    %218 = vsyncpa [#allocation6], 1
    %219 = vsyncpa [#allocation4], 1

</llo_original>
